<compile_context>
chip_gen: v7x
topology: tpu7x:2x2x1
jax: 0.10.0
libtpu: 0.0.40
codegen_flags: <defaults>
</compile_context>

<pallas_src>
import jax
import jax.numpy as jnp
import numpy as np
from jax.experimental import pallas as pl
from jax.experimental.pallas import tpu as pltpu  # noqa: F401  (TPU backend)

# Problem sizes (small, consistent with an image-quality forward pass)
B, C, H, W = 2, 3, 16, 16          # batch, image channels, spatial
C1 = 8                             # feature channels of the synthetic metric net
K = 3 * 3 * C                      # im2col contraction dim (kh*kw*C) = 27
HW = H * W                         # 256
N_HALF = B * HW                    # 512 columns per image set (target / ref)
N = 2 * N_HALF                     # 1024 fused columns: [target ++ reference]
OUT_ROWS, OUT_LANES = 8, 128       # one full (8,128) output tile


def _metric_kernel(w_ref, p_ref, o_ref):
    """Fused synthetic FR-IQA net, fully in VMEM.

    w_ref : (C1, K+1)  conv weight with bias folded in as the last column
    p_ref : (K+1, N)   im2col patches of [target ++ reference], ones row last
    o_ref : (8, 128)   per-image score in rows 0..B-1 (lane-broadcast), rest 0
    """
    # One MXU matmul covers both images; bias rides along via the ones row.
    f = jnp.dot(w_ref[...], p_ref[...], preferred_element_type=jnp.float32)
    f = jnp.maximum(f, 0.0)                       # (C1, N), lane-dense

    # target - reference features; both slice offsets are multiples of 128.
    d = f[:, :N_HALF] - f[:, N_HALF:]             # (C1, B*HW)
    sq = d * d

    inv_cnt = 1.0 / (C1 * HW)
    row_idx = jax.lax.broadcasted_iota(jnp.int32, (OUT_ROWS, OUT_LANES), 0)
    out = jnp.zeros((OUT_ROWS, OUT_LANES), jnp.float32)
    for b in range(B):                            # tiny static unroll
        s = jnp.sum(sq[:, b * HW:(b + 1) * HW]) * inv_cnt
        out = jnp.where(row_idx == b, s, out)
    o_ref[...] = out                              # full-tile unmasked store


def _im2col_3x3_t(x_nchw):
    """3x3, stride-1, 'same'-padding im2col, TRANSPOSED to (9*C, G*H*W).

    Row order = (kh, kw, c) ; column order = (image, h, w)."""
    g, c, h, w = x_nchw.shape
    xp = jnp.pad(x_nchw, ((0, 0), (0, 0), (1, 1), (1, 1)))
    taps = [xp[:, :, dh:dh + h, dw:dw + w]
            for dh in range(3) for dw in range(3)]      # 9 x (G, C, H, W)
    pat = jnp.stack(taps, axis=0)                       # (9, G, C, H, W)
    pat = jnp.transpose(pat, (0, 2, 1, 3, 4))           # (9, C, G, H, W)
    return pat.reshape(9 * c, g * h * w)                # (K, G*HW)


@jax.jit
def inference_model_forward(target, ref, weight, bias):
    """Equivalent of InferenceModel.forward in FR metric_mode:
    returns net(target, ref) -> one score per image, shape (B,)."""
    # Fuse target and reference along the image axis -> one patch matrix.
    x_all = jnp.concatenate([target, ref], axis=0).astype(jnp.float32)  # (2B,C,H,W)
    p = _im2col_3x3_t(x_all)                                            # (K, N)
    p_ext = jnp.concatenate([p, jnp.ones((1, N), jnp.float32)], axis=0)  # (K+1, N)

    # PyTorch conv weight (C1, C, 3, 3) -> (C1, K) with column order (kh,kw,c),
    # then fold the bias in as an extra column.
    w_kmat = jnp.transpose(weight, (0, 2, 3, 1)).reshape(C1, K).astype(jnp.float32)
    w_ext = jnp.concatenate(
        [w_kmat, bias.reshape(C1, 1).astype(jnp.float32)], axis=1)       # (C1, K+1)

    out = pl.pallas_call(
        _metric_kernel,
        out_shape=jax.ShapeDtypeStruct((OUT_ROWS, OUT_LANES), jnp.float32),
        in_specs=[
            pl.BlockSpec((C1, K + 1), lambda: (0, 0)),
            pl.BlockSpec((K + 1, N), lambda: (0, 0)),
        ],
        out_specs=pl.BlockSpec((OUT_ROWS, OUT_LANES), lambda: (0, 0)),
    )(w_ext, p_ext)

    return out[:B, 0]  # (B,) scores


# ----------------------------------------------------------------------------
# Pure-JAX reference (independent, non-transposed im2col layout).
# ----------------------------------------------------------------------------
def _im2col_3x3_ref(x_nhwc):
    b, h, w, c = x_nhwc.shape
    xp = jnp.pad(x_nhwc, ((0, 0), (1, 1), (1, 1), (0, 0)))
    cols = [xp[:, dh:dh + h, dw:dw + w, :] for dh in range(3) for dw in range(3)]
    return jnp.concatenate(cols, axis=-1).reshape(b, h * w, 9 * c)


def _reference_forward(target, ref, weight, bias):
    t = jnp.transpose(target, (0, 2, 3, 1)).astype(jnp.float32)
    r = jnp.transpose(ref, (0, 2, 3, 1)).astype(jnp.float32)
    pt = _im2col_3x3_ref(t)
    pr = _im2col_3x3_ref(r)
    # column order here is (kh, kw, c) -> weight transposed to (kh, kw, c, o)
    w_mat = jnp.transpose(weight, (2, 3, 1, 0)).reshape(K, C1).astype(jnp.float32)
    ft = jnp.maximum(pt @ w_mat + bias.reshape(1, 1, C1), 0.0)
    fr = jnp.maximum(pr @ w_mat + bias.reshape(1, 1, C1), 0.0)
    d = ft - fr
    return jnp.mean(d * d, axis=(1, 2))


if __name__ == "__main__":
    key = jax.random.PRNGKey(0)
    k_t, k_r, k_w, k_b = jax.random.split(key, 4)

    # Deterministic "images" in [0, 1], NCHW like PyTorch
    target = jax.random.uniform(k_t, (B, C, H, W), dtype=jnp.float32)
    ref = jax.random.uniform(k_r, (B, C, H, W), dtype=jnp.float32)

    # Deterministic synthetic metric-net parameters (no checkpoint loading)
    weight = 0.1 * jax.random.normal(k_w, (C1, C, 3, 3), dtype=jnp.float32)
    bias = 0.01 * jax.random.normal(k_b, (C1,), dtype=jnp.float32)

    scores = inference_model_forward(target, ref, weight, bias)
    scores = jax.block_until_ready(scores)

    expected = _reference_forward(target, ref, weight, bias)
    np.testing.assert_allclose(np.asarray(scores), np.asarray(expected),
                               rtol=1e-5, atol=1e-6)

    # TODO(synk): NR metric_mode (single-input nets), registry-specific
    # architectures, and imread2tensor file loading are not reproduced; this
    # implements the default FR tensor path.
    print("KERNEL_OK")
</pallas_src>

<mosaic_0001>
module attributes {stable_mosaic.version = 11 : i64} {
  func.func @_metric_kernel(%arg0: memref<8x28xf32, #tpu.memory_space<vmem>>, %arg1: memref<28x1024xf32, #tpu.memory_space<vmem>>, %arg2: memref<8x128xf32, #tpu.memory_space<vmem>>) attributes {dimension_semantics = [], scalar_prefetch = 0 : i64, scratch_operands = 0 : i64, tpu.core_type = #tpu.core_type<tc>} {
    %c0 = arith.constant 0 : index
    %c0_0 = arith.constant 0 : index
    %0 = vector.load %arg0[%c0, %c0_0] : memref<8x28xf32, #tpu.memory_space<vmem>>, vector<8x28xf32>
    %c0_1 = arith.constant 0 : index
    %c0_2 = arith.constant 0 : index
    %1 = vector.load %arg1[%c0_1, %c0_2] : memref<28x1024xf32, #tpu.memory_space<vmem>>, vector<28x1024xf32>
    %cst = arith.constant dense<0.000000e+00> : vector<8x1024xf32>
    %2 = tpu.matmul %0, %1, %cst {dimension_numbers = #tpu.dot_dimension_numbers<[1], [0], [0], [1], [0, 0, 1, 1], [], []>} : vector<8x28xf32>, vector<28x1024xf32>, vector<8x1024xf32> -> vector<8x1024xf32>
    %cst_3 = arith.constant 0.000000e+00 : f32
    %3 = vector.broadcast %cst_3 : f32 to vector<8x1024xf32>
    %4 = arith.maximumf %2, %3 : vector<8x1024xf32>
    %5 = vector.extract_strided_slice %4 {offsets = [0, 0], sizes = [8, 512], strides = [1, 1]} : vector<8x1024xf32> to vector<8x512xf32>
    %6 = vector.extract_strided_slice %4 {offsets = [0, 512], sizes = [8, 512], strides = [1, 1]} : vector<8x1024xf32> to vector<8x512xf32>
    %7 = arith.subf %5, %6 : vector<8x512xf32>
    %8 = arith.mulf %7, %7 : vector<8x512xf32>
    %9 = tpu.iota {dimensions = array<i32: 0>} : vector<8x128xi32>
    %cst_4 = arith.constant 0.000000e+00 : f32
    %10 = vector.broadcast %cst_4 : f32 to vector<8x128xf32>
    %11 = vector.extract_strided_slice %8 {offsets = [0, 0], sizes = [8, 256], strides = [1, 1]} : vector<8x512xf32> to vector<8x256xf32>
    %12 = vector.shape_cast %11 : vector<8x256xf32> to vector<1x8x256xf32>
    %cst_5 = arith.constant dense<0.000000e+00> : vector<1xf32>
    %13 = vector.multi_reduction <add>, %12, %cst_5 [1, 2] : vector<1x8x256xf32> to vector<1xf32>
    %14 = vector.shape_cast %13 : vector<1xf32> to vector<1x1x1xf32>
    %15 = vector.extract %14[0, 0, 0] : f32 from vector<1x1x1xf32>
    %cst_6 = arith.constant 4.8828125E-4 : f32
    %16 = arith.mulf %15, %cst_6 : f32
    %c0_i32 = arith.constant 0 : i32
    %17 = vector.broadcast %c0_i32 : i32 to vector<8x128xi32>
    %18 = arith.cmpi eq, %9, %17 : vector<8x128xi32>
    %19 = vector.broadcast %16 : f32 to vector<8x128xf32>
    %20 = arith.select %18, %19, %10 : vector<8x128xi1>, vector<8x128xf32>
    %21 = vector.extract_strided_slice %8 {offsets = [0, 256], sizes = [8, 256], strides = [1, 1]} : vector<8x512xf32> to vector<8x256xf32>
    %22 = vector.shape_cast %21 : vector<8x256xf32> to vector<1x8x256xf32>
    %cst_7 = arith.constant dense<0.000000e+00> : vector<1xf32>
    %23 = vector.multi_reduction <add>, %22, %cst_7 [1, 2] : vector<1x8x256xf32> to vector<1xf32>
    %24 = vector.shape_cast %23 : vector<1xf32> to vector<1x1x1xf32>
    %25 = vector.extract %24[0, 0, 0] : f32 from vector<1x1x1xf32>
    %cst_8 = arith.constant 4.8828125E-4 : f32
    %26 = arith.mulf %25, %cst_8 : f32
    %c1_i32 = arith.constant 1 : i32
    %27 = vector.broadcast %c1_i32 : i32 to vector<8x128xi32>
    %28 = arith.cmpi eq, %9, %27 : vector<8x128xi32>
    %29 = vector.broadcast %26 : f32 to vector<8x128xf32>
    %30 = arith.select %28, %29, %20 : vector<8x128xi1>, vector<8x128xf32>
    %c0_9 = arith.constant 0 : index
    %c0_10 = arith.constant 0 : index
    %31 = vector.load %arg2[%c0_9, %c0_10] : memref<8x128xf32, #tpu.memory_space<vmem>>, vector<8x128xf32>
    tpu.vector_store %arg2[%c0_9, %c0_10], %30 {strides = array<i32>} : memref<8x128xf32, #tpu.memory_space<vmem>>, vector<8x128xf32>,
    return
  }
}

</mosaic_0001>

<llo_original>
// kernel: inference_model_forward.1
$region0: #{inference_model_forward.1}
  #allocation0 [shape = 'u32[]', space=smem, size = 0x4, offset = 0x4, fixed_abs, tag = 'smem constant byte address 0x4 - core index']
  #allocation1 [shape = 'u32[144,128]{1,0:T(1,128)}', space=vmem, size = 0x12000, scoped, tag = 'internal scratch']
  %s0 = inlined_call_operand.vmem [shape: f32[8,28], index: 0, kind: input, shape index: {}]
  %s1 = inlined_call_operand.vmem [shape: f32[28,1024], index: 1, kind: input, shape index: {}]
  %s2 = inlined_call_operand.vmem [shape: f32[8,128], index: 2, kind: output, shape index: {}]
  %s3 = sld [smem:[#allocation0]]
  $region18: #{inference_model_forward.1} parent=0
    _
  %s5 = ssub.s32 1, %s3
  %s6 = scalar_select 0, %s5, %s3
  // Predicated region
  $region2: #{inference_model_forward.1} parent=0 // pred_check
    _
  $region3: #{inference_model_forward.1} parent=0 // pred_check_branch
    %8 = sbr.rel (0) target = $region5
  $region4: #{inference_model_forward.1} parent=0 // pred_region
    _
  $region5: #{inference_model_forward.1} parent=0 // pred_fallthru
    _
  // Predicated region
  $region6: #{inference_model_forward.1} parent=0 // pred_check
    _
  $region7: #{inference_model_forward.1} parent=0 // pred_check_branch
    %10 = sbr.rel (0) target = $region9
  $region8: #{inference_model_forward.1} parent=0 // pred_region
    _
  $region9: #{inference_model_forward.1} parent=0 // pred_fallthru
    _
  %v11 = vld [vmem:[%s0] sm:$0xff]
  %v12 = vld [vmem:[%s1] sm:$0xff]
  %v13 = vld [vmem:[%s1 + $0x8] sm:$0xff]
  %v14 = vld [vmem:[%s1 + $0x10] sm:$0xff]
  %v15 = vld [vmem:[%s1 + $0x18] sm:$0xff]
  %v16 = vld [vmem:[%s1 + $0x20] sm:$0xff]
  %v17 = vld [vmem:[%s1 + $0x28] sm:$0xff]
  %v18 = vld [vmem:[%s1 + $0x30] sm:$0xff]
  %v19 = vld [vmem:[%s1 + $0x38] sm:$0xff]
  %v20 = vld [vmem:[%s1 + $0x40] sm:$0xff]
  %v21 = vld [vmem:[%s1 + $0x48] sm:$0xff]
  %v22 = vld [vmem:[%s1 + $0x50] sm:$0xff]
  %v23 = vld [vmem:[%s1 + $0x58] sm:$0xff]
  %v24 = vld [vmem:[%s1 + $0x60] sm:$0xff]
  %v25 = vld [vmem:[%s1 + $0x68] sm:$0xff]
  %v26 = vld [vmem:[%s1 + $0x70] sm:$0xff]
  %v27 = vld [vmem:[%s1 + $0x78] sm:$0xff]
  %v28 = vld [vmem:[%s1 + $0x80] sm:$0xff]
  %v29 = vld [vmem:[%s1 + $0x88] sm:$0xff]
  %v30 = vld [vmem:[%s1 + $0x90] sm:$0xff]
  %v31 = vld [vmem:[%s1 + $0x98] sm:$0xff]
  %v32 = vld [vmem:[%s1 + $0xa0] sm:$0xff]
  %v33 = vld [vmem:[%s1 + $0xa8] sm:$0xff]
  %v34 = vld [vmem:[%s1 + $0xb0] sm:$0xff]
  %v35 = vld [vmem:[%s1 + $0xb8] sm:$0xff]
  %v36 = vld [vmem:[%s1 + $0xc0] sm:$0xf]
  %v37 = vld [vmem:[%s1 + $0xc8] sm:$0xf]
  %v38 = vld [vmem:[%s1 + $0xd0] sm:$0xf]
  %v39 = vld [vmem:[%s1 + $0xd8] sm:$0xf]
  %v40 = vld [vmem:[%s1 + $0xe0] sm:$0xf]
  %v41 = vld [vmem:[%s1 + $0xe8] sm:$0xf]
  %v42 = vld [vmem:[%s1 + $0xf0] sm:$0xf]
  %v43 = vld [vmem:[%s1 + $0xf8] sm:$0xf]
  %vm44 = vcmask 228352
  %v46 = vsel %vm44, %v11, 0
  %vm48 = vcmask 1043456
  %v50 = vsel %vm48, %v36, 0
  %v53 = vsel %vm48, %v37, 0
  %v56 = vsel %vm48, %v38, 0
  %v59 = vsel %vm48, %v39, 0
  %v62 = vsel %vm48, %v40, 0
  %v65 = vsel %vm48, %v41, 0
  %v68 = vsel %vm48, %v42, 0
  %v71 = vsel %vm48, %v43, 0
  %73 = vmatprep.subr.mxu0 %v13
  %74 = vmatpush1.msra.mxu0 %v12
  %75 = vmatprep.subr.mxu0 %v21
  %76 = vmatpush1.msra.mxu0 %v20
  %77 = vmatprep.subr.mxu0 %v29
  %78 = vmatpush1.msra.mxu0 %v28
  %79 = vmatprep.subr.mxu0 %v53
  %80 = vmatpush1.msra.mxu0 %v50
  %81 = vmatprep.subr.mxu0 0.0
  %82 = vmatpush1.msra.mxu0 0.0
  %83 = vmatprep.subr.mxu0 0.0
  %84 = vmatpush1.msra.mxu0 0.0
  %85 = vmatprep.subr.mxu0 0.0
  %86 = vmatpush1.msra.mxu0 0.0
  %87 = vmatprep.subr.mxu0 0.0
  %88 = vmatpush1.msra.mxu0 0.0
  %89 = vmatprep.subr.mxu0 0.0
  %90 = vmatpush1.msra.mxu0 0.0
  %91 = vmatprep.subr.mxu0 0.0
  %92 = vmatpush1.msra.mxu0 0.0
  %93 = vmatprep.subr.mxu0 0.0
  %94 = vmatpush1.msra.mxu0 0.0
  %95 = vmatprep.subr.mxu0 0.0
  %96 = vmatpush1.msra.mxu0 0.0
  %97 = vmatprep.subr.mxu0 0.0
  %98 = vmatpush1.msra.mxu0 0.0
  %99 = vmatprep.subr.mxu0 0.0
  %100 = vmatpush1.msra.mxu0 0.0
  %101 = vmatprep.subr.mxu0 0.0
  %102 = vmatpush1.msra.mxu0 0.0
  %103 = vmatprep.subr.mxu0 0.0
  %104 = vmatpush1.msra.mxu0 0.0
  %105 = vmatprep.subr.mxu0 0.0
  %106 = vmatpush1.msra.mxu0 0.0
  %107 = vmatprep.subr.mxu0 0.0
  %108 = vmatpush1.msra.mxu0 0.0
  %109 = vmatprep.subr.mxu0 0.0
  %110 = vmatpush1.msra.mxu0 0.0
  %111 = vmatprep.subr.mxu0 0.0
  %112 = vmatpush1.msra.mxu0 0.0
  %113 = vmatprep.subr.mxu0 0.0
  %114 = vmatpush1.msra.mxu0 0.0
  %115 = vmatprep.subr.mxu0 0.0
  %116 = vmatpush1.msra.mxu0 0.0
  %117 = vmatprep.subr.mxu0 0.0
  %118 = vmatpush1.msra.mxu0 0.0
  %119 = vmatprep.subr.mxu0 0.0
  %120 = vmatpush1.msra.mxu0 0.0
  %121 = vmatprep.subr.mxu0 0.0
  %122 = vmatpush1.msra.mxu0 0.0
  %123 = vmatprep.subr.mxu0 0.0
  %124 = vmatpush1.msra.mxu0 0.0
  %125 = vmatprep.subr.mxu0 0.0
  %126 = vmatpush1.msra.mxu0 0.0
  %127 = vmatprep.subr.mxu0 0.0
  %128 = vmatpush1.msra.mxu0 0.0
  %129 = vmatprep.subr.mxu0 0.0
  %130 = vmatpush1.msra.mxu0 0.0
  %131 = vmatprep.subr.mxu0 0.0
  %132 = vmatpush1.msra.mxu0 0.0
  %133 = vmatprep.subr.mxu0 0.0
  %134 = vmatpush1.msra.mxu0 0.0
  %135 = vmatprep.subr.mxu0 0.0
  %136 = vmatpush1.msra.mxu0 0.0
  %137 = vmatprep.mubr.f32.mxu0 0.0
  %138 = vmatmul.mubr.f32.gmra.mrb[0].mxu0 %v46
  %v139 = vpop.f32.mrb[0].mxu0
  %v140 = vadd.f32 0.0, %v139
  %v141 = vpop.f32.mrb[0].mxu0
  %v142 = vadd.f32 0.0, %v141
  %143 = vdwg.mxu0
  %144 = vmatprep.subr.mxu0 %v15
  %145 = vmatpush1.msra.mxu0 %v14
  %146 = vmatprep.subr.mxu0 %v23
  %147 = vmatpush1.msra.mxu0 %v22
  %148 = vmatprep.subr.mxu0 %v31
  %149 = vmatpush1.msra.mxu0 %v30
  %150 = vmatprep.subr.mxu0 %v59
  %151 = vmatpush1.msra.mxu0 %v56
  %152 = vmatprep.subr.mxu0 0.0
  %153 = vmatpush1.msra.mxu0 0.0
  %154 = vmatprep.subr.mxu0 0.0
  %155 = vmatpush1.msra.mxu0 0.0
  %156 = vmatprep.subr.mxu0 0.0
  %157 = vmatpush1.msra.mxu0 0.0
  %158 = vmatprep.subr.mxu0 0.0
  %159 = vmatpush1.msra.mxu0 0.0
  %160 = vmatprep.subr.mxu0 0.0
  %161 = vmatpush1.msra.mxu0 0.0
  %162 = vmatprep.subr.mxu0 0.0
  %163 = vmatpush1.msra.mxu0 0.0
  %164 = vmatprep.subr.mxu0 0.0
  %165 = vmatpush1.msra.mxu0 0.0
  %166 = vmatprep.subr.mxu0 0.0
  %167 = vmatpush1.msra.mxu0 0.0
  %168 = vmatprep.subr.mxu0 0.0
  %169 = vmatpush1.msra.mxu0 0.0
  %170 = vmatprep.subr.mxu0 0.0
  %171 = vmatpush1.msra.mxu0 0.0
  %172 = vmatprep.subr.mxu0 0.0
  %173 = vmatpush1.msra.mxu0 0.0
  %174 = vmatprep.subr.mxu0 0.0
  %175 = vmatpush1.msra.mxu0 0.0
  %176 = vmatprep.subr.mxu0 0.0
  %177 = vmatpush1.msra.mxu0 0.0
  %178 = vmatprep.subr.mxu0 0.0
  %179 = vmatpush1.msra.mxu0 0.0
  %180 = vmatprep.subr.mxu0 0.0
  %181 = vmatpush1.msra.mxu0 0.0
  %182 = vmatprep.subr.mxu0 0.0
  %183 = vmatpush1.msra.mxu0 0.0
  %184 = vmatprep.subr.mxu0 0.0
  %185 = vmatpush1.msra.mxu0 0.0
  %186 = vmatprep.subr.mxu0 0.0
  %187 = vmatpush1.msra.mxu0 0.0
  %188 = vmatprep.subr.mxu0 0.0
  %189 = vmatpush1.msra.mxu0 0.0
  %190 = vmatprep.subr.mxu0 0.0
  %191 = vmatpush1.msra.mxu0 0.0
  %192 = vmatprep.subr.mxu0 0.0
  %193 = vmatpush1.msra.mxu0 0.0
  %194 = vmatprep.subr.mxu0 0.0
  %195 = vmatpush1.msra.mxu0 0.0
  %196 = vmatprep.subr.mxu0 0.0
  %197 = vmatpush1.msra.mxu0 0.0
  %198 = vmatprep.subr.mxu0 0.0
  %199 = vmatpush1.msra.mxu0 0.0
  %200 = vmatprep.subr.mxu0 0.0
  %201 = vmatpush1.msra.mxu0 0.0
  %202 = vmatprep.subr.mxu0 0.0
  %203 = vmatpush1.msra.mxu0 0.0
  %204 = vmatprep.subr.mxu0 0.0
  %205 = vmatpush1.msra.mxu0 0.0
  %206 = vmatprep.subr.mxu0 0.0
  %207 = vmatpush1.msra.mxu0 0.0
  %208 = vmatprep.mubr.f32.mxu0 0.0
  %209 = vmatmul.mubr.f32.gmra.mrb[0].mxu0 %v46
  %v210 = vpop.f32.mrb[0].mxu0
  %v211 = vadd.f32 0.0, %v210
  %v212 = vpop.f32.mrb[0].mxu0
  %v213 = vadd.f32 0.0, %v212
  %214 = vdwg.mxu0
  %215 = vmatprep.subr.mxu0 %v17
  %216 = vmatpush1.msra.mxu0 %v16
  %217 = vmatprep.subr.mxu0 %v25
  %218 = vmatpush1.msra.mxu0 %v24
  %219 = vmatprep.subr.mxu0 %v33
  %220 = vmatpush1.msra.mxu0 %v32
  %221 = vmatprep.subr.mxu0 %v65
  %222 = vmatpush1.msra.mxu0 %v62
  %223 = vmatprep.subr.mxu0 0.0
  %224 = vmatpush1.msra.mxu0 0.0
  %225 = vmatprep.subr.mxu0 0.0
  %226 = vmatpush1.msra.mxu0 0.0
  %227 = vmatprep.subr.mxu0 0.0
  %228 = vmatpush1.msra.mxu0 0.0
  %229 = vmatprep.subr.mxu0 0.0
  %230 = vmatpush1.msra.mxu0 0.0
  %231 = vmatprep.subr.mxu0 0.0
  %232 = vmatpush1.msra.mxu0 0.0
  %233 = vmatprep.subr.mxu0 0.0
  %234 = vmatpush1.msra.mxu0 0.0
  %235 = vmatprep.subr.mxu0 0.0
  %236 = vmatpush1.msra.mxu0 0.0
  %237 = vmatprep.subr.mxu0 0.0
  %238 = vmatpush1.msra.mxu0 0.0
  %239 = vmatprep.subr.mxu0 0.0
  %240 = vmatpush1.msra.mxu0 0.0
  %241 = vmatprep.subr.mxu0 0.0
  %242 = vmatpush1.msra.mxu0 0.0
  %243 = vmatprep.subr.mxu0 0.0
  %244 = vmatpush1.msra.mxu0 0.0
  %245 = vmatprep.subr.mxu0 0.0
  %246 = vmatpush1.msra.mxu0 0.0
  %247 = vmatprep.subr.mxu0 0.0
  %248 = vmatpush1.msra.mxu0 0.0
  %249 = vmatprep.subr.mxu0 0.0
  %250 = vmatpush1.msra.mxu0 0.0
  %251 = vmatprep.subr.mxu0 0.0
  %252 = vmatpush1.msra.mxu0 0.0
  %253 = vmatprep.subr.mxu0 0.0
  %254 = vmatpush1.msra.mxu0 0.0
  %255 = vmatprep.subr.mxu0 0.0
  %256 = vmatpush1.msra.mxu0 0.0
  %257 = vmatprep.subr.mxu0 0.0
  %258 = vmatpush1.msra.mxu0 0.0
  %259 = vmatprep.subr.mxu0 0.0
  %260 = vmatpush1.msra.mxu0 0.0
  %261 = vmatprep.subr.mxu0 0.0
  %262 = vmatpush1.msra.mxu0 0.0
  %263 = vmatprep.subr.mxu0 0.0
  %264 = vmatpush1.msra.mxu0 0.0
  %265 = vmatprep.subr.mxu0 0.0
  %266 = vmatpush1.msra.mxu0 0.0
  %267 = vmatprep.subr.mxu0 0.0
  %268 = vmatpush1.msra.mxu0 0.0
  %269 = vmatprep.subr.mxu0 0.0
  %270 = vmatpush1.msra.mxu0 0.0
  %271 = vmatprep.subr.mxu0 0.0
  %272 = vmatpush1.msra.mxu0 0.0
  %273 = vmatprep.subr.mxu0 0.0
  %274 = vmatpush1.msra.mxu0 0.0
  %275 = vmatprep.subr.mxu0 0.0
  %276 = vmatpush1.msra.mxu0 0.0
  %277 = vmatprep.subr.mxu0 0.0
  %278 = vmatpush1.msra.mxu0 0.0
  %279 = vmatprep.mubr.f32.mxu0 0.0
  %280 = vmatmul.mubr.f32.gmra.mrb[0].mxu0 %v46
  %v281 = vpop.f32.mrb[0].mxu0
  %v282 = vadd.f32 0.0, %v281
  %v283 = vpop.f32.mrb[0].mxu0
  %v284 = vadd.f32 0.0, %v283
  %285 = vdwg.mxu0
  %286 = vmatprep.subr.mxu0 %v19
  %287 = vmatpush1.msra.mxu0 %v18
  %288 = vmatprep.subr.mxu0 %v27
  %289 = vmatpush1.msra.mxu0 %v26
  %290 = vmatprep.subr.mxu0 %v35
  %291 = vmatpush1.msra.mxu0 %v34
  %292 = vmatprep.subr.mxu0 %v71
  %293 = vmatpush1.msra.mxu0 %v68
  %294 = vmatprep.subr.mxu0 0.0
  %295 = vmatpush1.msra.mxu0 0.0
  %296 = vmatprep.subr.mxu0 0.0
  %297 = vmatpush1.msra.mxu0 0.0
  %298 = vmatprep.subr.mxu0 0.0
  %299 = vmatpush1.msra.mxu0 0.0
  %300 = vmatprep.subr.mxu0 0.0
  %301 = vmatpush1.msra.mxu0 0.0
  %302 = vmatprep.subr.mxu0 0.0
  %303 = vmatpush1.msra.mxu0 0.0
  %304 = vmatprep.subr.mxu0 0.0
  %305 = vmatpush1.msra.mxu0 0.0
  %306 = vmatprep.subr.mxu0 0.0
  %307 = vmatpush1.msra.mxu0 0.0
  %308 = vmatprep.subr.mxu0 0.0
  %309 = vmatpush1.msra.mxu0 0.0
  %310 = vmatprep.subr.mxu0 0.0
  %311 = vmatpush1.msra.mxu0 0.0
  %312 = vmatprep.subr.mxu0 0.0
  %313 = vmatpush1.msra.mxu0 0.0
  %314 = vmatprep.subr.mxu0 0.0
  %315 = vmatpush1.msra.mxu0 0.0
  %316 = vmatprep.subr.mxu0 0.0
  %317 = vmatpush1.msra.mxu0 0.0
  %318 = vmatprep.subr.mxu0 0.0
  %319 = vmatpush1.msra.mxu0 0.0
  %320 = vmatprep.subr.mxu0 0.0
  %321 = vmatpush1.msra.mxu0 0.0
  %322 = vmatprep.subr.mxu0 0.0
  %323 = vmatpush1.msra.mxu0 0.0
  %324 = vmatprep.subr.mxu0 0.0
  %325 = vmatpush1.msra.mxu0 0.0
  %326 = vmatprep.subr.mxu0 0.0
  %327 = vmatpush1.msra.mxu0 0.0
  %328 = vmatprep.subr.mxu0 0.0
  %329 = vmatpush1.msra.mxu0 0.0
  %330 = vmatprep.subr.mxu0 0.0
  %331 = vmatpush1.msra.mxu0 0.0
  %332 = vmatprep.subr.mxu0 0.0
  %333 = vmatpush1.msra.mxu0 0.0
  %334 = vmatprep.subr.mxu0 0.0
  %335 = vmatpush1.msra.mxu0 0.0
  %336 = vmatprep.subr.mxu0 0.0
  %337 = vmatpush1.msra.mxu0 0.0
  %338 = vmatprep.subr.mxu0 0.0
  %339 = vmatpush1.msra.mxu0 0.0
  %340 = vmatprep.subr.mxu0 0.0
  %341 = vmatpush1.msra.mxu0 0.0
  %342 = vmatprep.subr.mxu0 0.0
  %343 = vmatpush1.msra.mxu0 0.0
  %344 = vmatprep.subr.mxu0 0.0
  %345 = vmatpush1.msra.mxu0 0.0
  %346 = vmatprep.subr.mxu0 0.0
  %347 = vmatpush1.msra.mxu0 0.0
  %348 = vmatprep.subr.mxu0 0.0
  %349 = vmatpush1.msra.mxu0 0.0
  %350 = vmatprep.mubr.f32.mxu0 0.0
  %351 = vmatmul.mubr.f32.gmra.mrb[0].mxu0 %v46
  %v352 = vpop.f32.mrb[0].mxu0
  %v353 = vadd.f32 0.0, %v352
  %v354 = vpop.f32.mrb[0].mxu0
  %v355 = vadd.f32 0.0, %v354
  %356 = vdwg.mxu0
  %v357 = vmax.f32 %v140, 0.0
  %v358 = vmax.f32 %v142, 0.0
  %v359 = vmax.f32 %v211, 0.0
  %v360 = vmax.f32 %v213, 0.0
  %v361 = vmax.f32 %v282, 0.0
  %v362 = vmax.f32 %v284, 0.0
  %v363 = vmax.f32 %v353, 0.0
  %v364 = vmax.f32 %v355, 0.0
  %v365 = vsub.f32 %v357, %v361
  %v366 = vsub.f32 %v358, %v362
  %v367 = vsub.f32 %v359, %v363
  %v368 = vsub.f32 %v360, %v364
  %v369 = vmul.f32 %v365, %v365
  %v370 = vmul.f32 %v366, %v366
  %v371 = vmul.f32 %v367, %v367
  %v372 = vmul.f32 %v368, %v368
  %v373 = vlaneseq
  %v374 = vshrl.u32 %v373, 7
  %v375 = vadd.f32 %v369, %v370
  %376 = vadd.xlane.f32.xlu0 %v375
  %v377 = vpop.xlane.xlu0 %376
  %v378 = vrot.slane %v377, 4
  %v379 = vadd.f32 %v377, %v378
  %v380 = vrot.slane %v379, 2
  %v381 = vadd.f32 %v379, %v380
  %v382 = vrot.slane %v381, 1
  %v383 = vadd.f32 %v381, %v382
  %s384 = vtos %v383
  %s385 = smul.f32 %s384, 0.00048828125
  %vm386 = vcmp.eq.s32.totalorder %v374, 0
  %v387 = vstv %s385
  %v388 = vsel %vm386, %v387, 0.0
  %v389 = vadd.f32 %v371, %v372
  %390 = vadd.xlane.f32.xlu0 %v389
  %v391 = vpop.xlane.xlu0 %390
  %v392 = vrot.slane %v391, 4
  %v393 = vadd.f32 %v391, %v392
  %v394 = vrot.slane %v393, 2
  %v395 = vadd.f32 %v393, %v394
  %v396 = vrot.slane %v395, 1
  %v397 = vadd.f32 %v395, %v396
  %s398 = vtos %v397
  %s399 = smul.f32 %s398, 0.00048828125
  %vm400 = vcmp.eq.s32.totalorder %v374, 1
  %v401 = vstv %s399
  %v402 = vsel %vm400, %v401, %v388
  %403 = vst [vmem:[%s2] sm:$0xff] %v402
  // Predicated region
  $region10: #{inference_model_forward.1} parent=0 // pred_check
    _
  $region11: #{inference_model_forward.1} parent=0 // pred_check_branch
    %405 = sbr.rel (0) target = $region13
  $region12: #{inference_model_forward.1} parent=0 // pred_region
    _
  $region13: #{inference_model_forward.1} parent=0 // pred_fallthru
    _
  // Predicated region
  $region14: #{inference_model_forward.1} parent=0 // pred_check
    _
  $region15: #{inference_model_forward.1} parent=0 // pred_check_branch
    %407 = sbr.rel (0) target = $region17
  $region16: #{inference_model_forward.1} parent=0 // pred_region
    _
  $region17: #{inference_model_forward.1} parent=0 // pred_fallthru
    _

</llo_original>
